<compile_context>
chip_gen: v6e
topology: v6e:2x2x1
jax: 0.10.0
libtpu: 0.0.40
codegen_flags: <defaults>
</compile_context>

<pallas_src>
import jax
import jax.numpy as jnp
from jax.experimental import pallas as pl
from jax.experimental.pallas import tpu as pltpu


# ---------------------------------------------------------------------------
# Pallas kernel: fused 3-layer MLP (bf16 matmuls, f32 accumulation, ReLU chain)
# ---------------------------------------------------------------------------
def _mlp_kernel(x_ref, w1_ref, b1_ref, w2_ref, b2_ref, w3_ref, b3_ref, o_ref):
    x = x_ref[...]                                                       # bf16 [TILE_B, K]
    h1 = jnp.dot(x, w1_ref[...], preferred_element_type=jnp.float32) + b1_ref[...]
    h1 = jnp.maximum(h1, 0.0).astype(jnp.bfloat16)                       # ReLU, back to bf16
    h2 = jnp.dot(h1, w2_ref[...], preferred_element_type=jnp.float32) + b2_ref[...]
    h2 = jnp.maximum(h2, 0.0).astype(jnp.bfloat16)                       # ReLU
    h3 = jnp.dot(h2, w3_ref[...], preferred_element_type=jnp.float32) + b3_ref[...]
    o_ref[...] = jnp.maximum(h3, 0.0)                                    # final F.relu (f32, lane-dense)


def mlp_history_embedder_forward(service_history, params, max_N, SE):
    """Full MLPHistoryEmbedder.forward.

    Args:
      service_history: f32[B, N, SE]
      params: dict with w1[max_N*SE,256], b1[1,256], w2[256,128], b2[1,128],
              w3[128,SE], b3[1,SE]   (weights stored [in, out], i.e. transposed
              vs PyTorch's [out, in] so the kernel computes x @ W)
    Returns:
      f32[B, SE]
    """
    B, current_N, se = service_history.shape
    assert se == SE

    # --- _align_history without materializing the zero-pad ---
    # Zero-padded history rows contribute nothing to x @ w1, so instead of
    # concatenating zeros we shrink K and slice w1 accordingly (bit-identical).
    if current_N >= max_N:
        hist = service_history[:, -max_N:, :]
        k_dim = max_N * SE
    else:
        hist = service_history
        k_dim = current_N * SE
    x = hist.reshape(B, k_dim).astype(jnp.bfloat16)                      # [B, K]

    H1 = params["w1"].shape[1]        # 256
    H2 = params["w2"].shape[1]        # 128
    OUT_PAD = 128                     # lane-dense output width (>= SE, multiple of 128)

    # bf16 weights (halves HBM->VMEM weight traffic, native MXU path); f32 biases.
    w1 = params["w1"][:k_dim, :].astype(jnp.bfloat16)                    # [K, 256]
    b1 = params["b1"].astype(jnp.float32)                                # [1, 256]
    w2 = params["w2"].astype(jnp.bfloat16)                               # [256, 128]
    b2 = params["b2"].astype(jnp.float32)                                # [1, 128]
    # Pad layer-3 weight/bias out to a lane-dense 128-wide output slab.
    w3 = (jnp.zeros((H2, OUT_PAD), jnp.float32)
          .at[:, :SE].set(params["w3"]).astype(jnp.bfloat16))            # [128, 128]
    b3 = jnp.zeros((1, OUT_PAD), jnp.float32).at[:, :SE].set(params["b3"])

    # Batch tile: full 256-row MXU tiles at large B, small multiple-of-8 tile at tiny B.
    tile_b = min(256, max(8, ((B + 7) // 8) * 8))
    grid = (pl.cdiv(B, tile_b),)

    bytes_accessed = (x.size * 2 + w1.size * 2 + w2.size * 2 + w3.size * 2
                      + b1.size * 4 + b2.size * 4 + b3.size * 4 + B * OUT_PAD * 4)
    cost = pl.CostEstimate(
        flops=2 * B * (k_dim * H1 + H1 * H2 + H2 * OUT_PAD),
        transcendentals=0,
        bytes_accessed=bytes_accessed)

    out_padded = pl.pallas_call(
        _mlp_kernel,
        out_shape=jax.ShapeDtypeStruct((B, OUT_PAD), jnp.float32),
        grid=grid,
        in_specs=[
            pl.BlockSpec((tile_b, k_dim), lambda i: (i, 0)),   # x: streamed per batch tile
            pl.BlockSpec((k_dim, H1), lambda i: (0, 0)),       # w1: VMEM-resident
            pl.BlockSpec((1, H1), lambda i: (0, 0)),           # b1
            pl.BlockSpec((H1, H2), lambda i: (0, 0)),          # w2
            pl.BlockSpec((1, H2), lambda i: (0, 0)),           # b2
            pl.BlockSpec((H2, OUT_PAD), lambda i: (0, 0)),     # w3 (lane-dense padded)
            pl.BlockSpec((1, OUT_PAD), lambda i: (0, 0)),      # b3
        ],
        out_specs=pl.BlockSpec((tile_b, OUT_PAD), lambda i: (i, 0)),
        compiler_params=pltpu.CompilerParams(
            dimension_semantics=("parallel",),                 # v7x: shard batch tiles across 2 TCs
            vmem_limit_bytes=32 * 1024 * 1024),
        cost_estimate=cost,
    )(x, w1, b1, w2, b2, w3, b3)

    return out_padded[:, :SE]
    # TODO(synk): at tiny B this call is launch/weight-DMA bound; for production,
    # batch requests or keep weights VMEM-resident across calls (cross-call prefetch).


# ---------------------------------------------------------------------------
# Deterministic parameter initialization (synthetic, PyTorch-Linear-like shapes)
# ---------------------------------------------------------------------------
def init_params(key, max_N, SE, layer_sizes=(256, 128)):
    input_dim = max_N * SE
    dims = [input_dim, layer_sizes[0], layer_sizes[1], SE]
    params = {}
    for i in range(3):
        fan_in, fan_out = dims[i], dims[i + 1]
        key, kw, kb = jax.random.split(key, 3)
        bound = 1.0 / jnp.sqrt(fan_in)
        # stored as [in, out] so the kernel computes x @ W
        params[f"w{i+1}"] = jax.random.uniform(
            kw, (fan_in, fan_out), jnp.float32, -bound, bound)
        params[f"b{i+1}"] = jax.random.uniform(
            kb, (1, fan_out), jnp.float32, -bound, bound)
    return params


# ---------------------------------------------------------------------------
# Pure-JAX f32 reference (PyTorch semantics: explicit zero-pad path)
# ---------------------------------------------------------------------------
def _reference(service_history, params, max_N, SE):
    B, current_N, _ = service_history.shape
    missing_N = max_N - current_N
    if missing_N > 0:
        padding = jnp.zeros((B, missing_N, SE), dtype=service_history.dtype)
        aligned = jnp.concatenate((service_history, padding), axis=1)
    else:
        aligned = service_history[:, -max_N:, :]
    x = aligned.reshape(B, -1).astype(jnp.float32)
    x = jax.nn.relu(x @ params["w1"] + params["b1"])
    x = jax.nn.relu(x @ params["w2"] + params["b2"])
    x = x @ params["w3"] + params["b3"]
    return jax.nn.relu(x)


if __name__ == "__main__":
    # Small shapes consistent with the module: SE=32, max_N=8, history length N=5
    B, N, SE, MAX_N = 2, 5, 32, 8

    key = jax.random.PRNGKey(0)
    k_hist, k_params = jax.random.split(key)

    service_history = jax.random.normal(k_hist, (B, N, SE), dtype=jnp.float32)
    params = init_params(k_params, MAX_N, SE)

    out = mlp_history_embedder_forward(service_history, params, MAX_N, SE)
    out = jax.block_until_ready(out)

    ref = _reference(service_history, params, MAX_N, SE)
    assert out.shape == (B, SE)
    # bf16 matmul inputs (f32 accumulation) -> ~1e-2 relative error vs f32 reference.
    assert jnp.allclose(out, ref, atol=5e-2, rtol=5e-2), "mismatch vs reference"

    print("KERNEL_OK")
</pallas_src>

<mosaic_0001>
module attributes {stable_mosaic.version = 11 : i64} {
  func.func @_mlp_kernel(%arg0: i32, %arg1: memref<8x160xbf16, #tpu.memory_space<vmem>>, %arg2: memref<160x256xbf16, #tpu.memory_space<vmem>>, %arg3: memref<1x256xf32, #tpu.memory_space<vmem>>, %arg4: memref<256x128xbf16, #tpu.memory_space<vmem>>, %arg5: memref<1x128xf32, #tpu.memory_space<vmem>>, %arg6: memref<128x128xbf16, #tpu.memory_space<vmem>>, %arg7: memref<1x128xf32, #tpu.memory_space<vmem>>, %arg8: memref<8x128xf32, #tpu.memory_space<vmem>>) attributes {dimension_semantics = [#tpu.dimension_semantics<parallel>], iteration_bounds = array<i64: 1>, scalar_prefetch = 0 : i64, scratch_operands = 0 : i64, tpu.core_type = #tpu.core_type<tc>, window_params = [{transform_indices = @transform_0, window_bounds = array<i64: 8, 160>}, {pipeline_mode = #tpu.pipeline_mode<synchronous>, transform_indices = @transform_1, window_bounds = array<i64: 160, 256>}, {pipeline_mode = #tpu.pipeline_mode<synchronous>, transform_indices = @transform_2, window_bounds = array<i64: 1, 256>}, {pipeline_mode = #tpu.pipeline_mode<synchronous>, transform_indices = @transform_3, window_bounds = array<i64: 256, 128>}, {pipeline_mode = #tpu.pipeline_mode<synchronous>, transform_indices = @transform_4, window_bounds = array<i64: 1, 128>}, {pipeline_mode = #tpu.pipeline_mode<synchronous>, transform_indices = @transform_5, window_bounds = array<i64: 128, 128>}, {pipeline_mode = #tpu.pipeline_mode<synchronous>, transform_indices = @transform_6, window_bounds = array<i64: 1, 128>}, {transform_indices = @transform_7, window_bounds = array<i64: 8, 128>}]} {
    %c0 = arith.constant 0 : index
    %c0_0 = arith.constant 0 : index
    %0 = vector.load %arg1[%c0, %c0_0] : memref<8x160xbf16, #tpu.memory_space<vmem>>, vector<8x160xbf16>
    %c0_1 = arith.constant 0 : index
    %c0_2 = arith.constant 0 : index
    %1 = vector.load %arg2[%c0_1, %c0_2] : memref<160x256xbf16, #tpu.memory_space<vmem>>, vector<160x256xbf16>
    %cst = arith.constant dense<0.000000e+00> : vector<8x256xf32>
    %2 = tpu.matmul %0, %1, %cst {dimension_numbers = #tpu.dot_dimension_numbers<[1], [0], [0], [1], [0, 0, 1, 1], [], []>} : vector<8x160xbf16>, vector<160x256xbf16>, vector<8x256xf32> -> vector<8x256xf32>
    %c0_3 = arith.constant 0 : index
    %c0_4 = arith.constant 0 : index
    %3 = vector.load %arg3[%c0_3, %c0_4] : memref<1x256xf32, #tpu.memory_space<vmem>>, vector<1x256xf32>
    %4 = vector.broadcast %3 : vector<1x256xf32> to vector<8x256xf32>
    %5 = arith.addf %2, %4 : vector<8x256xf32>
    %cst_5 = arith.constant 0.000000e+00 : f32
    %6 = vector.broadcast %cst_5 : f32 to vector<8x256xf32>
    %7 = arith.maximumf %5, %6 : vector<8x256xf32>
    %8 = arith.truncf %7 : vector<8x256xf32> to vector<8x256xbf16>
    %c0_6 = arith.constant 0 : index
    %c0_7 = arith.constant 0 : index
    %9 = vector.load %arg4[%c0_6, %c0_7] : memref<256x128xbf16, #tpu.memory_space<vmem>>, vector<256x128xbf16>
    %cst_8 = arith.constant dense<0.000000e+00> : vector<8x128xf32>
    %10 = tpu.matmul %8, %9, %cst_8 {dimension_numbers = #tpu.dot_dimension_numbers<[1], [0], [0], [1], [0, 0, 1, 1], [], []>} : vector<8x256xbf16>, vector<256x128xbf16>, vector<8x128xf32> -> vector<8x128xf32>
    %c0_9 = arith.constant 0 : index
    %c0_10 = arith.constant 0 : index
    %11 = vector.load %arg5[%c0_9, %c0_10] : memref<1x128xf32, #tpu.memory_space<vmem>>, vector<1x128xf32>
    %12 = vector.broadcast %11 : vector<1x128xf32> to vector<8x128xf32>
    %13 = arith.addf %10, %12 : vector<8x128xf32>
    %cst_11 = arith.constant 0.000000e+00 : f32
    %14 = vector.broadcast %cst_11 : f32 to vector<8x128xf32>
    %15 = arith.maximumf %13, %14 : vector<8x128xf32>
    %16 = arith.truncf %15 : vector<8x128xf32> to vector<8x128xbf16>
    %c0_12 = arith.constant 0 : index
    %c0_13 = arith.constant 0 : index
    %17 = vector.load %arg6[%c0_12, %c0_13] : memref<128x128xbf16, #tpu.memory_space<vmem>>, vector<128x128xbf16>
    %cst_14 = arith.constant dense<0.000000e+00> : vector<8x128xf32>
    %18 = tpu.matmul %16, %17, %cst_14 {dimension_numbers = #tpu.dot_dimension_numbers<[1], [0], [0], [1], [0, 0, 1, 1], [], []>} : vector<8x128xbf16>, vector<128x128xbf16>, vector<8x128xf32> -> vector<8x128xf32>
    %c0_15 = arith.constant 0 : index
    %c0_16 = arith.constant 0 : index
    %19 = vector.load %arg7[%c0_15, %c0_16] : memref<1x128xf32, #tpu.memory_space<vmem>>, vector<1x128xf32>
    %20 = vector.broadcast %19 : vector<1x128xf32> to vector<8x128xf32>
    %21 = arith.addf %18, %20 : vector<8x128xf32>
    %cst_17 = arith.constant 0.000000e+00 : f32
    %22 = vector.broadcast %cst_17 : f32 to vector<8x128xf32>
    %23 = arith.maximumf %21, %22 : vector<8x128xf32>
    %c0_18 = arith.constant 0 : index
    %c0_19 = arith.constant 0 : index
    %24 = vector.load %arg8[%c0_18, %c0_19] : memref<8x128xf32, #tpu.memory_space<vmem>>, vector<8x128xf32>
    tpu.vector_store %arg8[%c0_18, %c0_19], %23 {strides = array<i32>} : memref<8x128xf32, #tpu.memory_space<vmem>>, vector<8x128xf32>,
    return
  }
  func.func @transform_0(%arg0: i32) -> (i32, i32) {
    %c0_i32 = arith.constant 0 : i32
    %c0_i32_0 = arith.constant 0 : i32
    return %arg0, %c0_i32 : i32, i32
  }
  func.func @transform_1(%arg0: i32) -> (i32, i32) {
    %c0_i32 = arith.constant 0 : i32
    %c0_i32_0 = arith.constant 0 : i32
    %c0_i32_1 = arith.constant 0 : i32
    return %c0_i32, %c0_i32_0 : i32, i32
  }
  func.func @transform_2(%arg0: i32) -> (i32, i32) {
    %c0_i32 = arith.constant 0 : i32
    %c0_i32_0 = arith.constant 0 : i32
    %c0_i32_1 = arith.constant 0 : i32
    return %c0_i32, %c0_i32_0 : i32, i32
  }
  func.func @transform_3(%arg0: i32) -> (i32, i32) {
    %c0_i32 = arith.constant 0 : i32
    %c0_i32_0 = arith.constant 0 : i32
    %c0_i32_1 = arith.constant 0 : i32
    return %c0_i32, %c0_i32_0 : i32, i32
  }
  func.func @transform_4(%arg0: i32) -> (i32, i32) {
    %c0_i32 = arith.constant 0 : i32
    %c0_i32_0 = arith.constant 0 : i32
    %c0_i32_1 = arith.constant 0 : i32
    return %c0_i32, %c0_i32_0 : i32, i32
  }
  func.func @transform_5(%arg0: i32) -> (i32, i32) {
    %c0_i32 = arith.constant 0 : i32
    %c0_i32_0 = arith.constant 0 : i32
    %c0_i32_1 = arith.constant 0 : i32
    return %c0_i32, %c0_i32_0 : i32, i32
  }
  func.func @transform_6(%arg0: i32) -> (i32, i32) {
    %c0_i32 = arith.constant 0 : i32
    %c0_i32_0 = arith.constant 0 : i32
    %c0_i32_1 = arith.constant 0 : i32
    return %c0_i32, %c0_i32_0 : i32, i32
  }
  func.func @transform_7(%arg0: i32) -> (i32, i32) {
    %c0_i32 = arith.constant 0 : i32
    %c0_i32_0 = arith.constant 0 : i32
    return %arg0, %c0_i32 : i32, i32
  }
}

</mosaic_0001>

<llo_original>
// kernel: tpu_custom_call.1
$region0: #{tpu_custom_call.1}
  #allocation0 [shape = 'u32[]', space=smem, size = 0x4, offset = 0x4, fixed_abs, tag = 'smem constant byte address 0x4 - core index']
  #allocation1 [shape = 'u32[144,128]{1,0:T(1,128)}', space=vmem, size = 0x12000, scoped, tag = 'internal scratch']
  %s0 = inlined_call_operand.hbm [shape: bf16[2,160], index: 0, kind: input, shape index: {}]
  %s1 = inlined_call_operand.hbm [shape: bf16[160,256], index: 1, kind: input, shape index: {}]
  %s2 = inlined_call_operand.vmem [shape: f32[1,256], index: 2, kind: input, shape index: {}]
  %s3 = inlined_call_operand.hbm [shape: bf16[256,128], index: 3, kind: input, shape index: {}]
  %s4 = inlined_call_operand.vmem [shape: f32[1,128], index: 4, kind: input, shape index: {}]
  %s5 = inlined_call_operand.hbm [shape: bf16[128,128], index: 5, kind: input, shape index: {}]
  %s6 = inlined_call_operand.vmem [shape: f32[1,128], index: 6, kind: input, shape index: {}]
  %s7 = inlined_call_operand.hbm [shape: f32[2,128], index: 7, kind: output, shape index: {}]
  %s8 = sld [smem:[#allocation0]]
  $region54: #{tpu_custom_call.1} parent=0
    _
  %s10 = ssub.s32 1, %s8
  %s11 = scalar_select 0, %s10, %s8
  $region1: #{tpu_custom_call.1} parent=0
    #allocation2 [shape = 'u8[4096]{0}', space=vmem, size = 0x1000, scoped, tag = 'input window, operand 0, single buffered']
    #allocation3 [shape = 's32[1]{0}', space=sflag, size = 0x4, scoped, tag = 'scoped memory for tpu_custom_call.1']
    #allocation4 [shape = 's32[1]{0}', space=sflag, size = 0x4, scoped, tag = 'scoped memory for tpu_custom_call.1']
    #allocation5 [shape = 'u8[81920]{0}', space=vmem, size = 0x14000, scoped, tag = 'input window, operand 1, single buffered']
    #allocation6 [shape = 's32[1]{0}', space=sflag, size = 0x4, scoped, tag = 'scoped memory for tpu_custom_call.1']
    #allocation7 [shape = 'u8[65536]{0}', space=vmem, size = 0x10000, scoped, tag = 'input window, operand 3, single buffered']
    #allocation8 [shape = 'u8[32768]{0}', space=vmem, size = 0x8000, scoped, tag = 'input window, operand 5, single buffered']
    #allocation9 [shape = 's32[1]{0}', space=sflag, size = 0x4, scoped, tag = 'scoped memory for tpu_custom_call.1']
    #allocation10 [shape = 'u8[4096]{0}', space=vmem, size = 0x1000, scoped, tag = 'output window, operand 0, single buffered']
    %12 = vsyncpa [#allocation3], 0
    %13 = vsyncpa [#allocation6], 0
    %14 = vsyncpa [#allocation9], 0
    %15 = vsyncpa [#allocation4], 0
    // Predicated region
    $region2: #{tpu_custom_call.1} parent=1 // pred_check
      _
    $region3: #{tpu_custom_call.1} parent=1 // pred_check_branch
      %17 = sbr.rel (0) target = $region5
    $region4: #{tpu_custom_call.1} parent=1 // pred_region
      %s19 = ssub.s32 128, 32
      %20 = vsyncadd [#allocation3], %s19
      %s21 = sshll.u32 [#allocation2], 4
      %s22 = int_to_ptr.vmem [resolvable:$true] %s21
      %27 = dma.hbm_to_vmem [thread:$0]  %s0, 32, %s22, [#allocation3], 32, 32, 2
    $region5: #{tpu_custom_call.1} parent=1 // pred_fallthru
      _
    // Predicated region
    $region6: #{tpu_custom_call.1} parent=1 // pred_check
      _
    $region7: #{tpu_custom_call.1} parent=1 // pred_check_branch
      %29 = sbr.rel (0) target = $region9
    $region8: #{tpu_custom_call.1} parent=1 // pred_region
      %s31 = ssub.s32 2560, 2560
      %32 = vsyncadd [#allocation6], %s31
      %s33 = sshll.u32 [#allocation5], 4
      %s34 = int_to_ptr.vmem [resolvable:$true] %s33
      %39 = dma.hbm_to_vmem [thread:$0]  %s1, 2560, %s34, [#allocation6], 128, 128, 8
    $region9: #{tpu_custom_call.1} parent=1 // pred_fallthru
      _
    // Predicated region
    $region10: #{tpu_custom_call.1} parent=1 // pred_check
      _
    $region11: #{tpu_custom_call.1} parent=1 // pred_check_branch
      %41 = sbr.rel (0) target = $region13
    $region12: #{tpu_custom_call.1} parent=1 // pred_region
      _
    $region13: #{tpu_custom_call.1} parent=1 // pred_fallthru
      _
    // Predicated region
    $region14: #{tpu_custom_call.1} parent=1 // pred_check
      _
    $region15: #{tpu_custom_call.1} parent=1 // pred_check_branch
      %43 = sbr.rel (0) target = $region17
    $region16: #{tpu_custom_call.1} parent=1 // pred_region
      %s45 = ssub.s32 2048, 2048
      %46 = vsyncadd [#allocation6], %s45
      %s47 = sshll.u32 [#allocation7], 4
      %s48 = int_to_ptr.vmem [resolvable:$true] %s47
      %53 = dma.hbm_to_vmem [thread:$0]  %s3, 2048, %s48, [#allocation6], 64, 64, 4
    $region17: #{tpu_custom_call.1} parent=1 // pred_fallthru
      _
    // Predicated region
    $region18: #{tpu_custom_call.1} parent=1 // pred_check
      _
    $region19: #{tpu_custom_call.1} parent=1 // pred_check_branch
      %55 = sbr.rel (0) target = $region21
    $region20: #{tpu_custom_call.1} parent=1 // pred_region
      _
    $region21: #{tpu_custom_call.1} parent=1 // pred_fallthru
      _
    // Predicated region
    $region22: #{tpu_custom_call.1} parent=1 // pred_check
      _
    $region23: #{tpu_custom_call.1} parent=1 // pred_check_branch
      %57 = sbr.rel (0) target = $region25
    $region24: #{tpu_custom_call.1} parent=1 // pred_region
      %s59 = ssub.s32 1024, 1024
      %60 = vsyncadd [#allocation9], %s59
      %s61 = sshll.u32 [#allocation8], 4
      %s62 = int_to_ptr.vmem [resolvable:$true] %s61
      %67 = dma.hbm_to_vmem [thread:$0]  %s5, 1024, %s62, [#allocation9], 64, 64, 4
    $region25: #{tpu_custom_call.1} parent=1 // pred_fallthru
      _
    // Predicated region
    $region26: #{tpu_custom_call.1} parent=1 // pred_check
      _
    $region27: #{tpu_custom_call.1} parent=1 // pred_check_branch
      %69 = sbr.rel (0) target = $region29
    $region28: #{tpu_custom_call.1} parent=1 // pred_region
      _
    $region29: #{tpu_custom_call.1} parent=1 // pred_fallthru
      _
    // Predicated region
    $region30: #{tpu_custom_call.1} parent=1 // pred_check
      _
    $region31: #{tpu_custom_call.1} parent=1 // pred_check_branch
      %71 = sbr.rel (0) target = $region33
    $region32: #{tpu_custom_call.1} parent=1 // pred_region
      %72 = dma.done [#allocation3], 128
    $region33: #{tpu_custom_call.1} parent=1 // pred_fallthru
      _
    // Predicated region
    $region34: #{tpu_custom_call.1} parent=1 // pred_check
      _
    $region35: #{tpu_custom_call.1} parent=1 // pred_check_branch
      %74 = sbr.rel (0) target = $region37
    $region36: #{tpu_custom_call.1} parent=1 // pred_region
      %75 = dma.done [#allocation6], 2560
    $region37: #{tpu_custom_call.1} parent=1 // pred_fallthru
      _
    // Predicated region
    $region38: #{tpu_custom_call.1} parent=1 // pred_check
      _
    $region39: #{tpu_custom_call.1} parent=1 // pred_check_branch
      %77 = sbr.rel (0) target = $region41
    $region40: #{tpu_custom_call.1} parent=1 // pred_region
      %78 = dma.done [#allocation6], 2048
    $region41: #{tpu_custom_call.1} parent=1 // pred_fallthru
      _
    // Predicated region
    $region42: #{tpu_custom_call.1} parent=1 // pred_check
      _
    $region43: #{tpu_custom_call.1} parent=1 // pred_check_branch
      %80 = sbr.rel (0) target = $region45
    $region44: #{tpu_custom_call.1} parent=1 // pred_region
      %81 = dma.done [#allocation9], 1024
    $region45: #{tpu_custom_call.1} parent=1 // pred_fallthru
      _
    %v83 = vld [vmem:[#allocation2] sm:$0x3]
    %v84 = vld [vmem:[#allocation2 + $0x2] sm:$0x3]
    %v85 = vld [vmem:[#allocation2 + $0x4] sm:$0x3]
    %v86 = vld [vmem:[#allocation2 + $0x6] sm:$0x3]
    %v87 = vld [vmem:[#allocation5] sm:$0xff]
    %v88 = vld [vmem:[#allocation5 + $0x8] sm:$0xff]
    %v89 = vld [vmem:[#allocation5 + $0x10] sm:$0xff]
    %v90 = vld [vmem:[#allocation5 + $0x18] sm:$0xff]
    %v91 = vld [vmem:[#allocation5 + $0x20] sm:$0xff]
    %v92 = vld [vmem:[#allocation5 + $0x28] sm:$0xff]
    %v93 = vld [vmem:[#allocation5 + $0x30] sm:$0xff]
    %v94 = vld [vmem:[#allocation5 + $0x38] sm:$0xff]
    %v95 = vld [vmem:[#allocation5 + $0x40] sm:$0xff]
    %v96 = vld [vmem:[#allocation5 + $0x48] sm:$0xff]
    %v97 = vld [vmem:[#allocation5 + $0x50] sm:$0xff]
    %v98 = vld [vmem:[#allocation5 + $0x58] sm:$0xff]
    %v99 = vld [vmem:[#allocation5 + $0x60] sm:$0xff]
    %v100 = vld [vmem:[#allocation5 + $0x68] sm:$0xff]
    %v101 = vld [vmem:[#allocation5 + $0x70] sm:$0xff]
    %v102 = vld [vmem:[#allocation5 + $0x78] sm:$0xff]
    %v103 = vld [vmem:[#allocation5 + $0x80] sm:$0xff]
    %v104 = vld [vmem:[#allocation5 + $0x88] sm:$0xff]
    %v105 = vld [vmem:[#allocation5 + $0x90] sm:$0xff]
    %v106 = vld [vmem:[#allocation5 + $0x98] sm:$0xff]
    %v107 = vld [vmem:[%s2] sm:$0x3]
    %v109 = vlaneseq
    %v110 = vshrl.u32 %v109, 7
    %v111 = vsub.s32 0, %v110
    %v112 = vrot.slane %v107, %v111
    %v113 = vlaneseq
    %v114 = vshrl.u32 %v113, 7
    %v115 = vsub.s32 1, %v114
    %v116 = vrot.slane %v107, %v115
    %v123 = vcombine.low %v83, %v84
    %v124 = vcombine.low %v85, %v86
    %v126 = vunpack.c.l.s4 1966171168
    %v127 = vunpack.c.0.s8 %v126
    %v128 = vlaneseq
    %v129 = vshrl.u32 %v128, 7
    %v130 = vsub.s32 %v127, %v129
    %v131 = vrot.slane %v123, %v130
    %v133 = vunpack.c.l.s4 1966171168
    %v134 = vunpack.c.0.s8 %v133
    %v135 = vlaneseq
    %v136 = vshrl.u32 %v135, 7
    %v137 = vsub.s32 %v134, %v136
    %v138 = vrot.slane %v124, %v137
    %v139 = vcombine.low %v131, %v138
    %v140 = vcombine.high %v131, %v138
    %v142 = vunpack.c.l.s4 1966171168
    %v143 = vunpack.c.0.s8 %v142
    %v144 = vlaneseq
    %v145 = vshrl.u32 %v144, 7
    %v146 = vsub.s32 %v143, %v145
    %v147 = vrot.slane %v139, %v146
    %v149 = vunpack.c.l.s4 1966171168
    %v150 = vunpack.c.0.s8 %v149
    %v151 = vlaneseq
    %v152 = vshrl.u32 %v151, 7
    %v153 = vsub.s32 %v150, %v152
    %v154 = vrot.slane %v140, %v153
    %v176 = vunpack.c.l.b16 %v87
    %v177 = vunpack.c.h.b16 %v87
    %v178 = vunpack.c.l.b16 %v88
    %v179 = vunpack.c.h.b16 %v88
    %v180 = vunpack.c.l.b16 %v89
    %v181 = vunpack.c.h.b16 %v89
    %v182 = vunpack.c.l.b16 %v90
    %v183 = vunpack.c.h.b16 %v90
    %v184 = vunpack.c.l.b16 %v91
    %v185 = vunpack.c.h.b16 %v91
    %v186 = vunpack.c.l.b16 %v92
    %v187 = vunpack.c.h.b16 %v92
    %v188 = vunpack.c.l.b16 %v93
    %v189 = vunpack.c.h.b16 %v93
    %v190 = vunpack.c.l.b16 %v94
    %v191 = vunpack.c.h.b16 %v94
    %v192 = vunpack.c.l.b16 %v95
    %v193 = vunpack.c.h.b16 %v95
    %v194 = vunpack.c.l.b16 %v96
    %v195 = vunpack.c.h.b16 %v96
    %v196 = vunpack.c.l.b16 %v97
    %v197 = vunpack.c.h.b16 %v97
    %v198 = vunpack.c.l.b16 %v98
    %v199 = vunpack.c.h.b16 %v98
    %v200 = vunpack.c.l.b16 %v99
    %v201 = vunpack.c.h.b16 %v99
    %v202 = vunpack.c.l.b16 %v100
    %v203 = vunpack.c.h.b16 %v100
    %v204 = vunpack.c.l.b16 %v101
    %v205 = vunpack.c.h.b16 %v101
    %v206 = vunpack.c.l.b16 %v102
    %v207 = vunpack.c.h.b16 %v102
    %v208 = vunpack.c.l.b16 %v103
    %v209 = vunpack.c.h.b16 %v103
    %v210 = vunpack.c.l.b16 %v104
    %v211 = vunpack.c.h.b16 %v104
    %v212 = vunpack.c.l.b16 %v105
    %v213 = vunpack.c.h.b16 %v105
    %v214 = vunpack.c.l.b16 %v106
    %v215 = vunpack.c.h.b16 %v106
    %v216 = vpack.c.b16 %v178, %v176
    %v217 = vpack.c.b16 %v179, %v177
    %v218 = vpack.c.b16 %v182, %v180
    %v219 = vpack.c.b16 %v183, %v181
    %v220 = vpack.c.b16 %v186, %v184
    %v221 = vpack.c.b16 %v187, %v185
    %v222 = vpack.c.b16 %v190, %v188
    %v223 = vpack.c.b16 %v191, %v189
    %v224 = vpack.c.b16 %v194, %v192
    %v225 = vpack.c.b16 %v195, %v193
    %v226 = vpack.c.b16 %v198, %v196
    %v227 = vpack.c.b16 %v199, %v197
    %v228 = vpack.c.b16 %v202, %v200
    %v229 = vpack.c.b16 %v203, %v201
    %v230 = vpack.c.b16 %v206, %v204
    %v231 = vpack.c.b16 %v207, %v205
    %v232 = vpack.c.b16 %v210, %v208
    %v233 = vpack.c.b16 %v211, %v209
    %v234 = vpack.c.b16 %v214, %v212
    %v235 = vpack.c.b16 %v215, %v213
    %vm256 = vcmask 261120
    %v258 = vsel %vm256, %v154, 0
    %260 = vmatprep.subr.bf16.mxu0 %v231
    %261 = vmatpush1.bf16.msra.mxu0 %v230
    %262 = vmatprep.subr.bf16.mxu0 %v229
    %263 = vmatpush1.bf16.msra.mxu0 %v228
    %264 = vmatprep.subr.bf16.mxu0 %v227
    %265 = vmatpush1.bf16.msra.mxu0 %v226
    %266 = vmatprep.subr.bf16.mxu0 %v225
    %267 = vmatpush1.bf16.msra.mxu0 %v224
    %268 = vmatprep.subr.bf16.mxu0 %v223
    %269 = vmatpush1.bf16.msra.mxu0 %v222
    %270 = vmatprep.subr.bf16.mxu0 %v221
    %271 = vmatpush1.bf16.msra.mxu0 %v220
    %272 = vmatprep.subr.bf16.mxu0 %v219
    %273 = vmatpush1.bf16.msra.mxu0 %v218
    %274 = vmatprep.subr.bf16.mxu0 %v217
    %275 = vmatpush1.bf16.msra.mxu0 %v216
    %276 = vmatprep.subr.bf16.mxu0 0
    %277 = vmatpush2.bf16.msra.mxu0 0
    %278 = vmatprep.subr.bf16.mxu0 0
    %279 = vmatpush2.bf16.msra.mxu0 0
    %280 = vmatprep.subr.bf16.mxu0 0
    %281 = vmatpush2.bf16.msra.mxu0 0
    %282 = vmatprep.subr.bf16.mxu0 0
    %283 = vmatpush2.bf16.msra.mxu0 0
    %284 = vmatprep.subr.bf16.mxu0 0
    %285 = vmatpush2.bf16.msra.mxu0 0
    %286 = vmatprep.subr.bf16.mxu0 0
    %287 = vmatpush2.bf16.msra.mxu0 0
    %288 = vmatprep.subr.bf16.mxu0 %v235
    %289 = vmatpush2.bf16.msra.mxu0 %v234
    %290 = vmatprep.subr.bf16.mxu0 %v233
    %291 = vmatpush2.bf16.msra.mxu0 %v232
    %292 = vmatprep.mubr.bf16.mxu0 %v258
    %293 = vmatmul.mubr.bf16.gmra.mxu0 %v147
    %v294 = vpop.f32.mrf.mxu0
    %v295 = vadd.f32 %v112, %v294
    %v296 = vpop.f32.mrf.mxu0
    %v297 = vadd.f32 %v116, %v296
    %v298 = vpop.f32.mrf.mxu0
    %v299 = vpop.f32.mrf.mxu0
    %300 = vdwg.mxu0
    %v301 = vmax.f32 %v295, 0.0
    %v302 = vmax.f32 %v297, 0.0
    %v303 = vpack.c.bf16 %v301, %v301
    %v304 = vpack.c.bf16 %v302, %v302
    %v305 = vld [vmem:[#allocation7] sm:$0xf]
    %v306 = vld [vmem:[#allocation7 + $0x4] sm:$0xf]
    %v307 = vld [vmem:[#allocation7 + $0x8] sm:$0xf]
    %v308 = vld [vmem:[#allocation7 + $0xc] sm:$0xf]
    %v309 = vld [vmem:[#allocation7 + $0x10] sm:$0xf]
    %v310 = vld [vmem:[#allocation7 + $0x14] sm:$0xf]
    %v311 = vld [vmem:[#allocation7 + $0x18] sm:$0xf]
    %v312 = vld [vmem:[#allocation7 + $0x1c] sm:$0xf]
    %v313 = vld [vmem:[#allocation7 + $0x20] sm:$0xf]
    %v314 = vld [vmem:[#allocation7 + $0x24] sm:$0xf]
    %v315 = vld [vmem:[#allocation7 + $0x28] sm:$0xf]
    %v316 = vld [vmem:[#allocation7 + $0x2c] sm:$0xf]
    %v317 = vld [vmem:[#allocation7 + $0x30] sm:$0xf]
    %v318 = vld [vmem:[#allocation7 + $0x34] sm:$0xf]
    %v319 = vld [vmem:[#allocation7 + $0x38] sm:$0xf]
    %v320 = vld [vmem:[#allocation7 + $0x3c] sm:$0xf]
    %v321 = vld [vmem:[#allocation7 + $0x40] sm:$0xf]
    %v322 = vld [vmem:[#allocation7 + $0x44] sm:$0xf]
    %v323 = vld [vmem:[#allocation7 + $0x48] sm:$0xf]
    %v324 = vld [vmem:[#allocation7 + $0x4c] sm:$0xf]
    %v325 = vld [vmem:[#allocation7 + $0x50] sm:$0xf]
    %v326 = vld [vmem:[#allocation7 + $0x54] sm:$0xf]
    %v327 = vld [vmem:[#allocation7 + $0x58] sm:$0xf]
    %v328 = vld [vmem:[#allocation7 + $0x5c] sm:$0xf]
    %v329 = vld [vmem:[#allocation7 + $0x60] sm:$0xf]
    %v330 = vld [vmem:[#allocation7 + $0x64] sm:$0xf]
    %v331 = vld [vmem:[#allocation7 + $0x68] sm:$0xf]
    %v332 = vld [vmem:[#allocation7 + $0x6c] sm:$0xf]
    %v333 = vld [vmem:[#allocation7 + $0x70] sm:$0xf]
    %v334 = vld [vmem:[#allocation7 + $0x74] sm:$0xf]
    %v335 = vld [vmem:[#allocation7 + $0x78] sm:$0xf]
    %v336 = vld [vmem:[#allocation7 + $0x7c] sm:$0xf]
    %v337 = vld [vmem:[%s4] sm:$0x1]
    %v339 = vlaneseq
    %v340 = vshrl.u32 %v339, 7
    %v341 = vsub.s32 0, %v340
    %v342 = vrot.slane %v337, %v341
    %v376 = vunpack.c.l.b16 %v305
    %v377 = vunpack.c.l.b16 %v306
    %v378 = vunpack.c.l.b16 %v307
    %v379 = vunpack.c.l.b16 %v308
    %v380 = vunpack.c.l.b16 %v309
    %v381 = vunpack.c.l.b16 %v310
    %v382 = vunpack.c.l.b16 %v311
    %v383 = vunpack.c.l.b16 %v312
    %v384 = vunpack.c.l.b16 %v313
    %v385 = vunpack.c.l.b16 %v314
    %v386 = vunpack.c.l.b16 %v315
    %v387 = vunpack.c.l.b16 %v316
    %v388 = vunpack.c.l.b16 %v317
    %v389 = vunpack.c.l.b16 %v318
    %v390 = vunpack.c.l.b16 %v319
    %v391 = vunpack.c.l.b16 %v320
    %v392 = vunpack.c.l.b16 %v321
    %v393 = vunpack.c.l.b16 %v322
    %v394 = vunpack.c.l.b16 %v323
    %v395 = vunpack.c.l.b16 %v324
    %v396 = vunpack.c.l.b16 %v325
    %v397 = vunpack.c.l.b16 %v326
    %v398 = vunpack.c.l.b16 %v327
    %v399 = vunpack.c.l.b16 %v328
    %v400 = vunpack.c.l.b16 %v329
    %v401 = vunpack.c.l.b16 %v330
    %v402 = vunpack.c.l.b16 %v331
    %v403 = vunpack.c.l.b16 %v332
    %v404 = vunpack.c.l.b16 %v333
    %v405 = vunpack.c.l.b16 %v334
    %v406 = vunpack.c.l.b16 %v335
    %v407 = vunpack.c.l.b16 %v336
    %v408 = vpack.c.b16 %v377, %v376
    %v409 = vpack.c.b16 %v379, %v378
    %v410 = vpack.c.b16 %v381, %v380
    %v411 = vpack.c.b16 %v383, %v382
    %v412 = vpack.c.b16 %v385, %v384
    %v413 = vpack.c.b16 %v387, %v386
    %v414 = vpack.c.b16 %v389, %v388
    %v415 = vpack.c.b16 %v391, %v390
    %v416 = vpack.c.b16 %v393, %v392
    %v417 = vpack.c.b16 %v395, %v394
    %v418 = vpack.c.b16 %v397, %v396
    %v419 = vpack.c.b16 %v399, %v398
    %v420 = vpack.c.b16 %v401, %v400
    %v421 = vpack.c.b16 %v403, %v402
    %v422 = vpack.c.b16 %v405, %v404
    %v423 = vpack.c.b16 %v407, %v406
    %440 = vmatprep.subr.bf16.mxu0 0
    %441 = vmatpush1.bf16.msra.mxu0 %v415
    %442 = vmatprep.subr.bf16.mxu0 0
    %443 = vmatpush1.bf16.msra.mxu0 %v414
    %444 = vmatprep.subr.bf16.mxu0 0
    %445 = vmatpush1.bf16.msra.mxu0 %v413
    %446 = vmatprep.subr.bf16.mxu0 0
    %447 = vmatpush1.bf16.msra.mxu0 %v412
    %448 = vmatprep.subr.bf16.mxu0 0
    %449 = vmatpush1.bf16.msra.mxu0 %v411
    %450 = vmatprep.subr.bf16.mxu0 0
    %451 = vmatpush1.bf16.msra.mxu0 %v410
    %452 = vmatprep.subr.bf16.mxu0 0
    %453 = vmatpush1.bf16.msra.mxu0 %v409
    %454 = vmatprep.subr.bf16.mxu0 0
    %455 = vmatpush1.bf16.msra.mxu0 %v408
    %456 = vmatprep.subr.bf16.mxu0 0
    %457 = vmatpush2.bf16.msra.mxu0 %v423
    %458 = vmatprep.subr.bf16.mxu0 0
    %459 = vmatpush2.bf16.msra.mxu0 %v422
    %460 = vmatprep.subr.bf16.mxu0 0
    %461 = vmatpush2.bf16.msra.mxu0 %v421
    %462 = vmatprep.subr.bf16.mxu0 0
    %463 = vmatpush2.bf16.msra.mxu0 %v420
    %464 = vmatprep.subr.bf16.mxu0 0
    %465 = vmatpush2.bf16.msra.mxu0 %v419
    %466 = vmatprep.subr.bf16.mxu0 0
    %467 = vmatpush2.bf16.msra.mxu0 %v418
    %468 = vmatprep.subr.bf16.mxu0 0
    %469 = vmatpush2.bf16.msra.mxu0 %v417
    %470 = vmatprep.subr.bf16.mxu0 0
    %471 = vmatpush2.bf16.msra.mxu0 %v416
    %472 = vmatprep.mubr.bf16.mxu0 %v304
    %473 = vmatmul.mubr.bf16.gmra.mxu0 %v303
    %v474 = vpop.f32.mrf.mxu0
    %v475 = vadd.f32 %v342, %v474
    %v476 = vpop.f32.mrf.mxu0
    %v477 = vpop.f32.mrf.mxu0
    %v478 = vpop.f32.mrf.mxu0
    %479 = vdwg.mxu0
    %v480 = vmax.f32 %v475, 0.0
    %v481 = vpack.c.bf16 %v480, %v480
    %v482 = vld [vmem:[#allocation8] sm:$0xf]
    %v483 = vld [vmem:[#allocation8 + $0x4] sm:$0xf]
    %v484 = vld [vmem:[#allocation8 + $0x8] sm:$0xf]
    %v485 = vld [vmem:[#allocation8 + $0xc] sm:$0xf]
    %v486 = vld [vmem:[#allocation8 + $0x10] sm:$0xf]
    %v487 = vld [vmem:[#allocation8 + $0x14] sm:$0xf]
    %v488 = vld [vmem:[#allocation8 + $0x18] sm:$0xf]
    %v489 = vld [vmem:[#allocation8 + $0x1c] sm:$0xf]
    %v490 = vld [vmem:[#allocation8 + $0x20] sm:$0xf]
    %v491 = vld [vmem:[#allocation8 + $0x24] sm:$0xf]
    %v492 = vld [vmem:[#allocation8 + $0x28] sm:$0xf]
    %v493 = vld [vmem:[#allocation8 + $0x2c] sm:$0xf]
    %v494 = vld [vmem:[#allocation8 + $0x30] sm:$0xf]
    %v495 = vld [vmem:[#allocation8 + $0x34] sm:$0xf]
    %v496 = vld [vmem:[#allocation8 + $0x38] sm:$0xf]
    %v497 = vld [vmem:[#allocation8 + $0x3c] sm:$0xf]
    %v498 = vld [vmem:[%s6] sm:$0x1]
    %v500 = vlaneseq
    %v501 = vshrl.u32 %v500, 7
    %v502 = vsub.s32 0, %v501
    %v503 = vrot.slane %v498, %v502
    %v521 = vunpack.c.l.b16 %v482
    %v522 = vunpack.c.l.b16 %v483
    %v523 = vunpack.c.l.b16 %v484
    %v524 = vunpack.c.l.b16 %v485
    %v525 = vunpack.c.l.b16 %v486
    %v526 = vunpack.c.l.b16 %v487
    %v527 = vunpack.c.l.b16 %v488
    %v528 = vunpack.c.l.b16 %v489
    %v529 = vunpack.c.l.b16 %v490
    %v530 = vunpack.c.l.b16 %v491
    %v531 = vunpack.c.l.b16 %v492
    %v532 = vunpack.c.l.b16 %v493
    %v533 = vunpack.c.l.b16 %v494
    %v534 = vunpack.c.l.b16 %v495
    %v535 = vunpack.c.l.b16 %v496
    %v536 = vunpack.c.l.b16 %v497
    %v537 = vpack.c.b16 %v522, %v521
    %v538 = vpack.c.b16 %v524, %v523
    %v539 = vpack.c.b16 %v526, %v525
    %v540 = vpack.c.b16 %v528, %v527
    %v541 = vpack.c.b16 %v530, %v529
    %v542 = vpack.c.b16 %v532, %v531
    %v543 = vpack.c.b16 %v534, %v533
    %v544 = vpack.c.b16 %v536, %v535
    %553 = vmatprep.subr.bf16.mxu0 0
    %554 = vmatpush1.bf16.msra.mxu0 %v544
    %555 = vmatprep.subr.bf16.mxu0 0
    %556 = vmatpush1.bf16.msra.mxu0 %v543
    %557 = vmatprep.subr.bf16.mxu0 0
    %558 = vmatpush1.bf16.msra.mxu0 %v542
    %559 = vmatprep.subr.bf16.mxu0 0
    %560 = vmatpush1.bf16.msra.mxu0 %v541
    %561 = vmatprep.subr.bf16.mxu0 0
    %562 = vmatpush1.bf16.msra.mxu0 %v540
    %563 = vmatprep.subr.bf16.mxu0 0
    %564 = vmatpush1.bf16.msra.mxu0 %v539
    %565 = vmatprep.subr.bf16.mxu0 0
    %566 = vmatpush1.bf16.msra.mxu0 %v538
    %567 = vmatprep.subr.bf16.mxu0 0
    %568 = vmatpush1.bf16.msra.mxu0 %v537
    %569 = vmatprep.subr.bf16.mxu0 0
    %570 = vmatpush2.bf16.msra.mxu0 0
    %571 = vmatprep.subr.bf16.mxu0 0
    %572 = vmatpush2.bf16.msra.mxu0 0
    %573 = vmatprep.subr.bf16.mxu0 0
    %574 = vmatpush2.bf16.msra.mxu0 0
    %575 = vmatprep.subr.bf16.mxu0 0
    %576 = vmatpush2.bf16.msra.mxu0 0
    %577 = vmatprep.subr.bf16.mxu0 0
    %578 = vmatpush2.bf16.msra.mxu0 0
    %579 = vmatprep.subr.bf16.mxu0 0
    %580 = vmatpush2.bf16.msra.mxu0 0
    %581 = vmatprep.subr.bf16.mxu0 0
    %582 = vmatpush2.bf16.msra.mxu0 0
    %583 = vmatprep.subr.bf16.mxu0 0
    %584 = vmatpush2.bf16.msra.mxu0 0
    %585 = vmatprep.mubr.bf16.mxu0 0
    %586 = vmatmul.mubr.bf16.gmra.mxu0 %v481
    %v587 = vpop.f32.mrf.mxu0
    %v588 = vadd.f32 %v503, %v587
    %v589 = vpop.f32.mrf.mxu0
    %v590 = vpop.f32.mrf.mxu0
    %v591 = vpop.f32.mrf.mxu0
    %592 = vdwg.mxu0
    %v593 = vmax.f32 %v588, 0.0
    %594 = vst [vmem:[#allocation10] sm:$0xff] %v593
    // Predicated region
    $region46: #{tpu_custom_call.1} parent=1 // pred_check
      _
    $region47: #{tpu_custom_call.1} parent=1 // pred_check_branch
      %596 = sbr.rel (0) target = $region49
    $region48: #{tpu_custom_call.1} parent=1 // pred_region
      %s598 = ssub.s32 128, 32
      %599 = vsyncadd [#allocation4], %s598
      %s600 = sshll.u32 [#allocation10], 4
      %s601 = int_to_ptr.vmem [resolvable:$true] %s600
      %606 = dma.vmem_to_hbm [thread:$0]  %s601, 32, %s7, [#allocation4], 32, 32, 2
    $region49: #{tpu_custom_call.1} parent=1 // pred_fallthru
      _
    // Predicated region
    $region50: #{tpu_custom_call.1} parent=1 // pred_check
      _
    $region51: #{tpu_custom_call.1} parent=1 // pred_check_branch
      %608 = sbr.rel (0) target = $region53
    $region52: #{tpu_custom_call.1} parent=1 // pred_region
      %609 = dma.done [#allocation4], 128
    $region53: #{tpu_custom_call.1} parent=1 // pred_fallthru
      _
    %610 = vsyncpa [#allocation3], 1
    %611 = vsyncpa [#allocation6], 1
    %612 = vsyncpa [#allocation9], 1
    %613 = vsyncpa [#allocation4], 1

</llo_original>
